<compile_context>
chip_gen: v5e
topology: v5e:2x2
jax: 0.10.0
libtpu: 0.0.40
codegen_flags: <defaults>
</compile_context>

<pallas_src>
import jax
import jax.numpy as jnp
from jax.experimental import pallas as pl
from jax.experimental.pallas import tpu as pltpu


IN_F = 78
HID_F = 60
OUT_F = 40


def _round_up(a, m):
    return (a + m - 1) // m * m


def encoder_kernel(x_ref, w1_ref, b1_ref, w2_ref, b2_ref, o_ref):
    # Layer 1: (TB, 78) @ (78, 60) on the MXU, bf16 operands / f32 accumulation.
    x = x_ref[...].astype(jnp.bfloat16)  # no-op if the caller already supplies bf16
    h = jnp.dot(x, w1_ref[...], preferred_element_type=jnp.float32)
    # Bias add (VPU) + tanh (EUP) in f32.
    # TODO(synk): on v6e/v7x a bf16 tanh halves EUP pushes; kept f32 (v5e-safe, better numerics).
    h = jnp.tanh(h + b1_ref[...])

    # Layer 2: (TB, 60) @ (60, 40), bf16 operands / f32 accumulation.
    out = jnp.dot(h.astype(jnp.bfloat16), w2_ref[...],
                  preferred_element_type=jnp.float32)
    o_ref[...] = (out + b2_ref[...]).astype(o_ref.dtype)


def _choose_tile(b_pad, tb):
    """Batch tile: multiple of 8, <= tb, and >= 2 grid steps whenever B allows (megacore)."""
    tb = max(8, _round_up(min(tb, b_pad), 8))
    if b_pad <= tb and b_pad >= 16:
        # Split into two tiles so ("parallel",) can use both v7x TensorCores.
        return _round_up((b_pad + 1) // 2, 8)
    return tb


def gen_autoencoder_encoder(x, w1, b1, w2, b2, *, tb=4096):
    """Forward pass of GEN_autoEncoder_Encoder.

    x : (B, 78)  f32 or bf16
    w1: (78, 60) (PyTorch hidden_layer_1.weight.T)
    b1: (1, 60)
    w2: (60, 40) (PyTorch hidden_layer_2.weight.T)
    b2: (1, 40)
    tb: max batch tile (multiple of 8). 4096 keeps double-buffered x+out tiles
        (~2.8 MB f32) far inside scoped VMEM on v5e/v6e/v7x while amortizing the
        per-grid-step fixed cost.

    Note: MXU operands are bf16 (f32 accumulation), so results differ slightly
    from an f32-exact PyTorch forward (tolerance ~2e-2).
    """
    B = x.shape[0]
    assert x.shape[1] == IN_F

    # Single conditional pad: batch only needs sublane (8) alignment.
    B_pad = _round_up(B, 8)
    if B_pad != B:
        x = jnp.pad(x, ((0, B_pad - B), (0, 0)))

    # Tiny weights: cast to bf16 once here, not per grid step inside the kernel.
    w1_bf = w1.astype(jnp.bfloat16)
    w2_bf = w2.astype(jnp.bfloat16)
    b1 = b1.astype(jnp.float32)
    b2 = b2.astype(jnp.float32)

    TB = _choose_tile(B_pad, tb)
    grid = (pl.cdiv(B_pad, TB),)

    itemsize = jnp.dtype(x.dtype).itemsize
    cost = pl.CostEstimate(
        flops=2 * B_pad * (IN_F * HID_F + HID_F * OUT_F),
        transcendentals=B_pad * HID_F,
        bytes_accessed=(B_pad * IN_F * itemsize            # x read
                        + B_pad * OUT_F * itemsize         # out write
                        + (IN_F * HID_F + HID_F * OUT_F) * 2
                        + (HID_F + OUT_F) * 4),
    )

    out = pl.pallas_call(
        encoder_kernel,
        out_shape=jax.ShapeDtypeStruct((B_pad, OUT_F), x.dtype),
        grid_spec=pltpu.PrefetchScalarGridSpec(
            num_scalar_prefetch=0,
            grid=grid,
            in_specs=[
                pl.BlockSpec((TB, IN_F), lambda i: (i, 0)),      # x tile (pipelined)
                pl.BlockSpec((IN_F, HID_F), lambda i: (0, 0)),   # w1 bf16 (VMEM-resident)
                pl.BlockSpec((1, HID_F), lambda i: (0, 0)),      # b1
                pl.BlockSpec((HID_F, OUT_F), lambda i: (0, 0)),  # w2 bf16 (VMEM-resident)
                pl.BlockSpec((1, OUT_F), lambda i: (0, 0)),      # b2
            ],
            out_specs=pl.BlockSpec((TB, OUT_F), lambda i: (i, 0)),
        ),
        compiler_params=pltpu.CompilerParams(
            dimension_semantics=("parallel",),  # shard batch tiles across TCs (v7x)
        ),
        cost_estimate=cost,
    )(x, w1_bf, b1, w2_bf, b2)

    return out[:B] if B_pad != B else out


def init_params(key):
    """Deterministic init mimicking PyTorch nn.Linear default (uniform +/- 1/sqrt(fan_in))."""
    k1, k2, k3, k4 = jax.random.split(key, 4)
    bound1 = 1.0 / jnp.sqrt(IN_F)
    bound2 = 1.0 / jnp.sqrt(HID_F)
    # Stored transposed relative to PyTorch: (in, out)
    w1 = jax.random.uniform(k1, (IN_F, HID_F), jnp.float32, -bound1, bound1)
    b1 = jax.random.uniform(k2, (1, HID_F), jnp.float32, -bound1, bound1)
    w2 = jax.random.uniform(k3, (HID_F, OUT_F), jnp.float32, -bound2, bound2)
    b2 = jax.random.uniform(k4, (1, OUT_F), jnp.float32, -bound2, bound2)
    return w1, b1, w2, b2


def reference_forward(x, w1, b1, w2, b2):
    h = jnp.tanh(x @ w1 + b1)
    return h @ w2 + b2


if __name__ == "__main__":
    key = jax.random.PRNGKey(0)
    kx, kp = jax.random.split(key)

    # Small demo batch. The tile chooser splits B=64 into 2 grid steps of 32 rows,
    # exercising the batch-tiled pipeline + megacore-friendly grid at tiny size.
    B = 64
    x = jax.random.normal(kx, (B, IN_F), jnp.float32)
    w1, b1, w2, b2 = init_params(kp)

    out = gen_autoencoder_encoder(x, w1, b1, w2, b2)
    out = jax.block_until_ready(out)

    ref = reference_forward(x, w1, b1, w2, b2)
    assert out.shape == (B, OUT_F)
    # bf16 MXU operands (f32 accumulation) -> loosened tolerance vs the f32 reference.
    assert jnp.allclose(out, ref, atol=2e-2, rtol=2e-2), "mismatch vs pure-JAX reference"

    print("KERNEL_OK")
</pallas_src>

<mosaic_0001>
module attributes {stable_mosaic.version = 11 : i64} {
  func.func @encoder_kernel(%arg0: i32, %arg1: memref<32x78xf32, #tpu.memory_space<vmem>>, %arg2: memref<78x60xbf16, #tpu.memory_space<vmem>>, %arg3: memref<1x60xf32, #tpu.memory_space<vmem>>, %arg4: memref<60x40xbf16, #tpu.memory_space<vmem>>, %arg5: memref<1x40xf32, #tpu.memory_space<vmem>>, %arg6: memref<32x40xf32, #tpu.memory_space<vmem>>) attributes {dimension_semantics = [#tpu.dimension_semantics<parallel>], iteration_bounds = array<i64: 2>, scalar_prefetch = 0 : i64, scratch_operands = 0 : i64, tpu.core_type = #tpu.core_type<tc>, window_params = [{transform_indices = @transform_0, window_bounds = array<i64: 32, 78>}, {pipeline_mode = #tpu.pipeline_mode<synchronous>, transform_indices = @transform_1, window_bounds = array<i64: 78, 60>}, {pipeline_mode = #tpu.pipeline_mode<synchronous>, transform_indices = @transform_2, window_bounds = array<i64: 1, 60>}, {pipeline_mode = #tpu.pipeline_mode<synchronous>, transform_indices = @transform_3, window_bounds = array<i64: 60, 40>}, {pipeline_mode = #tpu.pipeline_mode<synchronous>, transform_indices = @transform_4, window_bounds = array<i64: 1, 40>}, {transform_indices = @transform_5, window_bounds = array<i64: 32, 40>}]} {
    %c0 = arith.constant 0 : index
    %c0_0 = arith.constant 0 : index
    %0 = vector.load %arg1[%c0, %c0_0] : memref<32x78xf32, #tpu.memory_space<vmem>>, vector<32x78xf32>
    %1 = arith.truncf %0 : vector<32x78xf32> to vector<32x78xbf16>
    %c0_1 = arith.constant 0 : index
    %c0_2 = arith.constant 0 : index
    %2 = vector.load %arg2[%c0_1, %c0_2] : memref<78x60xbf16, #tpu.memory_space<vmem>>, vector<78x60xbf16>
    %cst = arith.constant dense<0.000000e+00> : vector<32x60xf32>
    %3 = tpu.matmul %1, %2, %cst {dimension_numbers = #tpu.dot_dimension_numbers<[1], [0], [0], [1], [0, 0, 1, 1], [], []>} : vector<32x78xbf16>, vector<78x60xbf16>, vector<32x60xf32> -> vector<32x60xf32>
    %c0_3 = arith.constant 0 : index
    %c0_4 = arith.constant 0 : index
    %4 = vector.load %arg3[%c0_3, %c0_4] : memref<1x60xf32, #tpu.memory_space<vmem>>, vector<1x60xf32>
    %5 = vector.broadcast %4 : vector<1x60xf32> to vector<32x60xf32>
    %6 = arith.addf %3, %5 : vector<32x60xf32>
    %7 = math.tanh %6 : vector<32x60xf32>
    %8 = arith.truncf %7 : vector<32x60xf32> to vector<32x60xbf16>
    %c0_5 = arith.constant 0 : index
    %c0_6 = arith.constant 0 : index
    %9 = vector.load %arg4[%c0_5, %c0_6] : memref<60x40xbf16, #tpu.memory_space<vmem>>, vector<60x40xbf16>
    %cst_7 = arith.constant dense<0.000000e+00> : vector<32x40xf32>
    %10 = tpu.matmul %8, %9, %cst_7 {dimension_numbers = #tpu.dot_dimension_numbers<[1], [0], [0], [1], [0, 0, 1, 1], [], []>} : vector<32x60xbf16>, vector<60x40xbf16>, vector<32x40xf32> -> vector<32x40xf32>
    %c0_8 = arith.constant 0 : index
    %c0_9 = arith.constant 0 : index
    %11 = vector.load %arg5[%c0_8, %c0_9] : memref<1x40xf32, #tpu.memory_space<vmem>>, vector<1x40xf32>
    %12 = vector.broadcast %11 : vector<1x40xf32> to vector<32x40xf32>
    %13 = arith.addf %10, %12 : vector<32x40xf32>
    %c0_10 = arith.constant 0 : index
    %c0_11 = arith.constant 0 : index
    %14 = vector.load %arg6[%c0_10, %c0_11] : memref<32x40xf32, #tpu.memory_space<vmem>>, vector<32x40xf32>
    tpu.vector_store %arg6[%c0_10, %c0_11], %13 {strides = array<i32>} : memref<32x40xf32, #tpu.memory_space<vmem>>, vector<32x40xf32>,
    return
  }
  func.func @transform_0(%arg0: i32) -> (i32, i32) {
    %c0_i32 = arith.constant 0 : i32
    %c0_i32_0 = arith.constant 0 : i32
    return %arg0, %c0_i32 : i32, i32
  }
  func.func @transform_1(%arg0: i32) -> (i32, i32) {
    %c0_i32 = arith.constant 0 : i32
    %c0_i32_0 = arith.constant 0 : i32
    %c0_i32_1 = arith.constant 0 : i32
    return %c0_i32, %c0_i32_0 : i32, i32
  }
  func.func @transform_2(%arg0: i32) -> (i32, i32) {
    %c0_i32 = arith.constant 0 : i32
    %c0_i32_0 = arith.constant 0 : i32
    %c0_i32_1 = arith.constant 0 : i32
    return %c0_i32, %c0_i32_0 : i32, i32
  }
  func.func @transform_3(%arg0: i32) -> (i32, i32) {
    %c0_i32 = arith.constant 0 : i32
    %c0_i32_0 = arith.constant 0 : i32
    %c0_i32_1 = arith.constant 0 : i32
    return %c0_i32, %c0_i32_0 : i32, i32
  }
  func.func @transform_4(%arg0: i32) -> (i32, i32) {
    %c0_i32 = arith.constant 0 : i32
    %c0_i32_0 = arith.constant 0 : i32
    %c0_i32_1 = arith.constant 0 : i32
    return %c0_i32, %c0_i32_0 : i32, i32
  }
  func.func @transform_5(%arg0: i32) -> (i32, i32) {
    %c0_i32 = arith.constant 0 : i32
    %c0_i32_0 = arith.constant 0 : i32
    return %arg0, %c0_i32 : i32, i32
  }
}

</mosaic_0001>

<llo_original>
// kernel: tpu_custom_call.1
$region0: #{tpu_custom_call.1}
  #allocation0 [shape = 'u32[]', space=smem, size = 0x4, offset = 0x4, fixed_abs, tag = 'smem constant byte address 0x4 - core index']
  #allocation1 [shape = 'u32[72,128]{1,0:T(1,128)}', space=vmem, size = 0x9000, scoped, tag = 'internal scratch']
  %s0 = inlined_call_operand.vmem [shape: f32[64,78], index: 0, kind: input, shape index: {}]
  %s1 = inlined_call_operand.vmem [shape: bf16[78,60], index: 1, kind: input, shape index: {}]
  %s2 = inlined_call_operand.vmem [shape: f32[1,60], index: 2, kind: input, shape index: {}]
  %s3 = inlined_call_operand.vmem [shape: bf16[60,40], index: 3, kind: input, shape index: {}]
  %s4 = inlined_call_operand.vmem [shape: f32[1,40], index: 4, kind: input, shape index: {}]
  %s5 = inlined_call_operand.vmem [shape: f32[64,40], index: 5, kind: output, shape index: {}]
  %s6 = sld [smem:[#allocation0]]
  $region53: #{tpu_custom_call.1} parent=0
    _
  %s8 = ssub.s32 1, %s6
  %s9 = scalar_select 0, %s8, %s6
  loop: start=0, step=1, limit=4
  $region2: #{tpu_custom_call.1} parent=0 // loop_pre_header
    _
  $region3: #{tpu_custom_call.1} parent=0 // loop_header
    %s11 = sphi 0, %s15
    %p12 = scmp.ge.s32.totalorder %s11, 4
    %s21 = sphi 0, %s23
    %s24 = sphi 0, %s21
    %s25 = sphi 0, %s24
    %s41 = sphi 0, %s25
    %s45 = sphi 0, %s45
    %s47 = sphi 0, %s45
    %s48 = sphi 0, %s47
    %s62 = sphi 0, %s48
    %s66 = sphi 0, %s66
    %s68 = sphi 0, %s66
    %s69 = sphi 0, %s68
    %s83 = sphi 0, %s69
    %s87 = sphi 0, %s87
    %s89 = sphi 0, %s87
    %s90 = sphi 0, %s89
    %s104 = sphi 0, %s90
    %s108 = sphi 0, %s108
    %s110 = sphi 0, %s108
    %s111 = sphi 0, %s110
    %s125 = sphi 0, %s111
    %s131 = sphi 0, %s133
    %s134 = sphi 0, %s131
    %s135 = sphi 0, %s134
    %s151 = sphi 0, %s135
  $region4: #{tpu_custom_call.1} parent=0 // loop_header_branch
    %14 = sbr.rel (%p12) target = $region8
  $region5: #{tpu_custom_call.1} parent=0 // loop_body
    %s16 = ssub.s32 %s11, 1
    %s17 = ssub.s32 %s11, 2
    %s18 = sadd.s32 %s11, 1
    %s19 = ssub.s32 %s11, %s18
    %p20 = scmp.eq.s32.totalorder %s19, 0
    %s22 = sadd.s32 %s21, 1
    %s23 = scalar_select %p20, %s21, %s22
    %p26 = pneg %p20
    %p27 = scmp.eq.s32.totalorder %s11, 1
    %p28 = por %p26, %p27
    %p29 = scmp.ne.s32.totalorder %s21, %s24
    %p30 = scmp.eq.s32.totalorder %s11, 0
    %p31 = por %p29, %p30
    %p32 = scmp.ne.s32.totalorder %s21, %s24
    %p33 = scmp.eq.s32.totalorder %s16, 1
    %p34 = por %p32, %p33
    %p35 = scmp.ne.s32.totalorder %s24, %s25
    %p36 = scmp.eq.s32.totalorder %s16, 0
    %p37 = por %p35, %p36
    %p38 = scmp.ne.s32.totalorder %s24, %s25
    %p39 = scmp.eq.s32.totalorder %s17, 1
    %p40 = por %p38, %p39
    %p42 = scmp.ne.s32.totalorder %s25, %s41
    %p43 = scmp.eq.s32.totalorder %s17, 0
    %p44 = por %p42, %p43
    %s46 = sadd.s32 %s45, 1
    %p49 = scmp.eq.s32.totalorder %s11, 1
    %p50 = scmp.ne.s32.totalorder %s45, %s47
    %p51 = scmp.eq.s32.totalorder %s11, 0
    %p52 = por %p50, %p51
    %p53 = scmp.ne.s32.totalorder %s45, %s47
    %p54 = scmp.eq.s32.totalorder %s16, 1
    %p55 = por %p53, %p54
    %p56 = scmp.ne.s32.totalorder %s47, %s48
    %p57 = scmp.eq.s32.totalorder %s16, 0
    %p58 = por %p56, %p57
    %p59 = scmp.ne.s32.totalorder %s47, %s48
    %p60 = scmp.eq.s32.totalorder %s17, 1
    %p61 = por %p59, %p60
    %p63 = scmp.ne.s32.totalorder %s48, %s62
    %p64 = scmp.eq.s32.totalorder %s17, 0
    %p65 = por %p63, %p64
    %s67 = sadd.s32 %s66, 1
    %p70 = scmp.eq.s32.totalorder %s11, 1
    %p71 = scmp.ne.s32.totalorder %s66, %s68
    %p72 = scmp.eq.s32.totalorder %s11, 0
    %p73 = por %p71, %p72
    %p74 = scmp.ne.s32.totalorder %s66, %s68
    %p75 = scmp.eq.s32.totalorder %s16, 1
    %p76 = por %p74, %p75
    %p77 = scmp.ne.s32.totalorder %s68, %s69
    %p78 = scmp.eq.s32.totalorder %s16, 0
    %p79 = por %p77, %p78
    %p80 = scmp.ne.s32.totalorder %s68, %s69
    %p81 = scmp.eq.s32.totalorder %s17, 1
    %p82 = por %p80, %p81
    %p84 = scmp.ne.s32.totalorder %s69, %s83
    %p85 = scmp.eq.s32.totalorder %s17, 0
    %p86 = por %p84, %p85
    %s88 = sadd.s32 %s87, 1
    %p91 = scmp.eq.s32.totalorder %s11, 1
    %p92 = scmp.ne.s32.totalorder %s87, %s89
    %p93 = scmp.eq.s32.totalorder %s11, 0
    %p94 = por %p92, %p93
    %p95 = scmp.ne.s32.totalorder %s87, %s89
    %p96 = scmp.eq.s32.totalorder %s16, 1
    %p97 = por %p95, %p96
    %p98 = scmp.ne.s32.totalorder %s89, %s90
    %p99 = scmp.eq.s32.totalorder %s16, 0
    %p100 = por %p98, %p99
    %p101 = scmp.ne.s32.totalorder %s89, %s90
    %p102 = scmp.eq.s32.totalorder %s17, 1
    %p103 = por %p101, %p102
    %p105 = scmp.ne.s32.totalorder %s90, %s104
    %p106 = scmp.eq.s32.totalorder %s17, 0
    %p107 = por %p105, %p106
    %s109 = sadd.s32 %s108, 1
    %p112 = scmp.eq.s32.totalorder %s11, 1
    %p113 = scmp.ne.s32.totalorder %s108, %s110
    %p114 = scmp.eq.s32.totalorder %s11, 0
    %p115 = por %p113, %p114
    %p116 = scmp.ne.s32.totalorder %s108, %s110
    %p117 = scmp.eq.s32.totalorder %s16, 1
    %p118 = por %p116, %p117
    %p119 = scmp.ne.s32.totalorder %s110, %s111
    %p120 = scmp.eq.s32.totalorder %s16, 0
    %p121 = por %p119, %p120
    %p122 = scmp.ne.s32.totalorder %s110, %s111
    %p123 = scmp.eq.s32.totalorder %s17, 1
    %p124 = por %p122, %p123
    %p126 = scmp.ne.s32.totalorder %s111, %s125
    %p127 = scmp.eq.s32.totalorder %s17, 0
    %p128 = por %p126, %p127
    %s129 = ssub.s32 %s11, %s18
    %p130 = scmp.eq.s32.totalorder %s129, 0
    %s132 = sadd.s32 %s131, 1
    %s133 = scalar_select %p130, %s131, %s132
    %p136 = pneg %p130
    %p137 = scmp.eq.s32.totalorder %s11, 1
    %p138 = por %p136, %p137
    %p139 = scmp.ne.s32.totalorder %s131, %s134
    %p140 = scmp.eq.s32.totalorder %s11, 0
    %p141 = por %p139, %p140
    %p142 = scmp.ne.s32.totalorder %s131, %s134
    %p143 = scmp.eq.s32.totalorder %s16, 1
    %p144 = por %p142, %p143
    %p145 = scmp.ne.s32.totalorder %s134, %s135
    %p146 = scmp.eq.s32.totalorder %s16, 0
    %p147 = por %p145, %p146
    %p148 = scmp.ne.s32.totalorder %s134, %s135
    %p149 = scmp.eq.s32.totalorder %s17, 1
    %p150 = por %p148, %p149
    %p152 = scmp.ne.s32.totalorder %s135, %s151
    %p153 = scmp.eq.s32.totalorder %s17, 0
    %p154 = por %p152, %p153
    %p155 = scmp.le.s32.totalorder 1, %s11
    %p156 = scmp.lt.s32.totalorder %s11, 3
    %p157 = pnand %p155, %p156
    %p158 = pneg %p157
    // Predicated region
    $region9: #{tpu_custom_call.1} parent=5 // pred_check
      _
    $region10: #{tpu_custom_call.1} parent=5 // pred_check_branch
      %160 = sbr.rel (%p157) target = $region12
    $region11: #{tpu_custom_call.1} parent=5 // pred_region
      %s161 = ssub.s32 %s11, 1
      // Predicated region
      $region13: #{tpu_custom_call.1} parent=11 // pred_check
        %p162 = pneg %p58
      $region14: #{tpu_custom_call.1} parent=11 // pred_check_branch
        %164 = sbr.rel (%p162) target = $region16
      $region15: #{tpu_custom_call.1} parent=11 // pred_region
        _
      $region16: #{tpu_custom_call.1} parent=11 // pred_fallthru
        _
      // Predicated region
      $region17: #{tpu_custom_call.1} parent=11 // pred_check
        %p165 = pneg %p79
      $region18: #{tpu_custom_call.1} parent=11 // pred_check_branch
        %167 = sbr.rel (%p165) target = $region20
      $region19: #{tpu_custom_call.1} parent=11 // pred_region
        _
      $region20: #{tpu_custom_call.1} parent=11 // pred_fallthru
        _
      // Predicated region
      $region21: #{tpu_custom_call.1} parent=11 // pred_check
        %p168 = pneg %p100
      $region22: #{tpu_custom_call.1} parent=11 // pred_check_branch
        %170 = sbr.rel (%p168) target = $region24
      $region23: #{tpu_custom_call.1} parent=11 // pred_region
        _
      $region24: #{tpu_custom_call.1} parent=11 // pred_fallthru
        _
      // Predicated region
      $region25: #{tpu_custom_call.1} parent=11 // pred_check
        %p171 = pneg %p121
      $region26: #{tpu_custom_call.1} parent=11 // pred_check_branch
        %173 = sbr.rel (%p171) target = $region28
      $region27: #{tpu_custom_call.1} parent=11 // pred_region
        _
      $region28: #{tpu_custom_call.1} parent=11 // pred_fallthru
        _
    $region12: #{tpu_custom_call.1} parent=5 // pred_fallthru
      _
    %p174 = scmp.lt.s32.totalorder %s11, 2
    // Predicated region
    $region29: #{tpu_custom_call.1} parent=5 // pred_check
      %p175 = pneg %p174
    $region30: #{tpu_custom_call.1} parent=5 // pred_check_branch
      %177 = sbr.rel (%p175) target = $region32
    $region31: #{tpu_custom_call.1} parent=5 // pred_region
      // Predicated region
      $region33: #{tpu_custom_call.1} parent=31 // pred_check
        %p178 = pneg %p31
      $region34: #{tpu_custom_call.1} parent=31 // pred_check_branch
        %180 = sbr.rel (%p178) target = $region36
      $region35: #{tpu_custom_call.1} parent=31 // pred_region
        %s181 = smul.u32 4, %s11
        %p182 = scmp.lt.s32.totalorder %s181, 7
        %s183 = scalar_select %p182, %s181, 7
        %s184 = smul.addr %s183, 8
        %s185 = scalar_lea.vmem %s0, %s184
        %s186 = smul.u32 4, %s11
      $region36: #{tpu_custom_call.1} parent=31 // pred_fallthru
        _
    $region32: #{tpu_custom_call.1} parent=5 // pred_fallthru
      _
    %p187 = scmp.le.s32.totalorder 1, %s11
    %p188 = scmp.lt.s32.totalorder %s11, 3
    %p189 = pnand %p187, %p188
    %p190 = pneg %p189
    // Predicated region
    $region37: #{tpu_custom_call.1} parent=5 // pred_check
      _
    $region38: #{tpu_custom_call.1} parent=5 // pred_check_branch
      %192 = sbr.rel (%p189) target = $region40
    $region39: #{tpu_custom_call.1} parent=5 // pred_region
      %s193 = ssub.s32 %s11, 1
      %s194 = smul.u32 4, %s16
      %p195 = scmp.lt.s32.totalorder %s194, 7
      %s196 = scalar_select %p195, %s194, 7
      %s197 = smul.addr %s196, 8
      %s198 = scalar_lea.vmem %s0, %s197
      %p199 = pneg %p37
      %p200 = pneg %p34
      %p201 = pneg %p58
      %p202 = pneg %p55
      %p203 = pneg %p79
      %p204 = pneg %p76
      %p205 = pneg %p100
      %p206 = pneg %p97
      %p207 = pneg %p121
      %p208 = pneg %p118
      %p209 = pneg %p147
      %p210 = pneg %p144
      %s211 = smul.u32 4, %s16
      %p212 = scmp.lt.s32.totalorder %s211, 7
      %s213 = scalar_select %p212, %s211, 7
      %s214 = smul.addr %s213, 8
      %s215 = scalar_lea.vmem %s5, %s214
      %s216 = smul.u32 4, %s16
      %p217 = scmp.lt.s32.totalorder %s216, 7
      %s218 = scalar_select %p217, %s216, 7
      %s219 = smul.addr %s218, 8
      %s220 = scalar_lea.vmem %s0, %s219
      %s221 = smul.u32 4, %s16
      %s222 = smul.u32 4, %s16
      %p223 = scmp.lt.s32.totalorder %s222, 7
      %s224 = scalar_select %p223, %s222, 7
      %s225 = smul.addr %s224, 8
      %s226 = scalar_lea.vmem %s5, %s225
      %s227 = smul.u32 4, %s16
      %v229 = vld [vmem:[%s220] sm:$0xff]
      %v230 = vld [vmem:[%s220 + $0x8] sm:$0xff]
      %v231 = vld [vmem:[%s220 + $0x10] sm:$0xff]
      %v232 = vld [vmem:[%s220 + $0x18] sm:$0xff]
      %v233 = vpack.c.bf16 %v230, %v229
      %v234 = vpack.c.bf16 %v232, %v231
      %v235 = vld [vmem:[%s1] sm:$0xf]
      %v236 = vld [vmem:[%s1 + $0x4] sm:$0xf]
      %v237 = vld [vmem:[%s1 + $0x8] sm:$0xf]
      %v238 = vld [vmem:[%s1 + $0xc] sm:$0xf]
      %v239 = vld [vmem:[%s1 + $0x10] sm:$0xf]
      %v240 = vld [vmem:[%s1 + $0x14] sm:$0xf]
      %v241 = vld [vmem:[%s1 + $0x18] sm:$0xf]
      %v242 = vld [vmem:[%s1 + $0x1c] sm:$0xf]
      %v243 = vld [vmem:[%s1 + $0x20] sm:$0xf]
      %v244 = vld [vmem:[%s1 + $0x24] sm:$0x7]
      %v245 = vld [vmem:[%s2] sm:$0x1]
      %v247 = vperm.slane %v245, 0
      %v259 = vunpack.c.l.b16 %v235
      %v260 = vunpack.c.l.b16 %v236
      %v261 = vunpack.c.l.b16 %v237
      %v262 = vunpack.c.l.b16 %v238
      %v263 = vunpack.c.l.b16 %v239
      %v264 = vunpack.c.l.b16 %v240
      %v265 = vunpack.c.l.b16 %v241
      %v266 = vunpack.c.l.b16 %v242
      %v267 = vunpack.c.l.b16 %v243
      %v268 = vunpack.c.l.b16 %v244
      %v269 = vpack.c.b16 %v260, %v259
      %v270 = vpack.c.b16 %v262, %v261
      %v271 = vpack.c.b16 %v264, %v263
      %v272 = vpack.c.b16 %v266, %v265
      %v273 = vpack.c.b16 %v268, %v267
      %vm278 = vcmask 637952
      %v280 = vsel %vm278, %v233, 0
      %v283 = vsel %vm278, %v234, 0
      %vm285 = vcmask 1046528
      %v287 = vsel %vm285, %v273, 0
      %289 = vmatpush.bf16.msra.mxu0 0
      %290 = vmatpush.bf16.msra.mxu0 0
      %291 = vmatpush.bf16.msra.mxu0 0
      %292 = vmatpush.bf16.msra.mxu0 %v287
      %293 = vmatpush.bf16.msra.mxu0 %v272
      %294 = vmatpush.bf16.msra.mxu0 %v271
      %295 = vmatpush.bf16.msra.mxu0 %v270
      %296 = vmatpush.bf16.msra.mxu0 %v269
      %297 = vmatmul.bf16.gmra.mxu0 %v280
      %v298 = vpop.f32.mrf.mxu0
      %v299 = vadd.f32 %v247, %v298
      %v300 = vpop.f32.mrf.mxu0
      %v301 = vadd.f32 %v247, %v300
      %302 = vmatmul.bf16.gmra.mxu0 %v283
      %v303 = vpop.f32.mrf.mxu0
      %v304 = vadd.f32 %v247, %v303
      %v305 = vpop.f32.mrf.mxu0
      %v306 = vadd.f32 %v247, %v305
      %307 = vdwg.mxu0
      %v308 = vtanh.pop %v299
      %v309 = vtanh.pop %v301
      %v310 = vtanh.pop %v304
      %v311 = vtanh.pop %v306
      %v312 = vpack.c.bf16 %v309, %v308
      %v313 = vpack.c.bf16 %v311, %v310
      %v314 = vld [vmem:[%s3] sm:$0xf]
      %v315 = vld [vmem:[%s3 + $0x4] sm:$0xf]
      %v316 = vld [vmem:[%s3 + $0x8] sm:$0xf]
      %v317 = vld [vmem:[%s3 + $0xc] sm:$0xf]
      %v318 = vld [vmem:[%s3 + $0x10] sm:$0xf]
      %v319 = vld [vmem:[%s3 + $0x14] sm:$0xf]
      %v320 = vld [vmem:[%s3 + $0x18] sm:$0xf]
      %v321 = vld [vmem:[%s3 + $0x1c] sm:$0x3]
      %v322 = vld [vmem:[%s4] sm:$0x1]
      %v324 = vperm.slane %v322, 0
      %v334 = vunpack.c.l.b16 %v314
      %v335 = vunpack.c.l.b16 %v315
      %v336 = vunpack.c.l.b16 %v316
      %v337 = vunpack.c.l.b16 %v317
      %v338 = vunpack.c.l.b16 %v318
      %v339 = vunpack.c.l.b16 %v319
      %v340 = vunpack.c.l.b16 %v320
      %v341 = vunpack.c.l.b16 %v321
      %v342 = vpack.c.b16 %v335, %v334
      %v343 = vpack.c.b16 %v337, %v336
      %v344 = vpack.c.b16 %v339, %v338
      %v345 = vpack.c.b16 %v341, %v340
      %vm349 = vcmask 490496
      %v351 = vsel %vm349, %v312, 0
      %v354 = vsel %vm349, %v313, 0
      %vm356 = vcmask 1045504
      %v358 = vsel %vm356, %v345, 0
      %360 = vmatpush.bf16.msra.mxu0 0
      %361 = vmatpush.bf16.msra.mxu0 0
      %362 = vmatpush.bf16.msra.mxu0 0
      %363 = vmatpush.bf16.msra.mxu0 0
      %364 = vmatpush.bf16.msra.mxu0 %v358
      %365 = vmatpush.bf16.msra.mxu0 %v344
      %366 = vmatpush.bf16.msra.mxu0 %v343
      %367 = vmatpush.bf16.msra.mxu0 %v342
      %368 = vmatmul.bf16.gmra.mxu0 %v351
      %v369 = vpop.f32.mrf.mxu0
      %v370 = vadd.f32 %v324, %v369
      %v371 = vpop.f32.mrf.mxu0
      %v372 = vadd.f32 %v324, %v371
      %373 = vmatmul.bf16.gmra.mxu0 %v354
      %v374 = vpop.f32.mrf.mxu0
      %v375 = vadd.f32 %v324, %v374
      %v376 = vpop.f32.mrf.mxu0
      %v377 = vadd.f32 %v324, %v376
      %378 = vdwg.mxu0
      %vm379 = vcmask 326656
      %380 = vst.msk [vmem:[%s226] sm:$0xff] %vm379, %v370
      %381 = vst.msk [vmem:[%s226 + $0x8] sm:$0xff] %vm379, %v372
      %382 = vst.msk [vmem:[%s226 + $0x10] sm:$0xff] %vm379, %v375
      %383 = vst.msk [vmem:[%s226 + $0x18] sm:$0xff] %vm379, %v377
      %s384 = smul.u32 4, %s16
      %p385 = scmp.lt.s32.totalorder %s384, 7
      %s386 = scalar_select %p385, %s384, 7
      %s387 = smul.addr %s386, 8
      %s388 = scalar_lea.vmem %s5, %s387
      // Predicated region
      $region41: #{tpu_custom_call.1} parent=39 // pred_check
        %p389 = pneg %p144
      $region42: #{tpu_custom_call.1} parent=39 // pred_check_branch
        %391 = sbr.rel (%p389) target = $region44
      $region43: #{tpu_custom_call.1} parent=39 // pred_region
        %s392 = smul.u32 4, %s16
      $region44: #{tpu_custom_call.1} parent=39 // pred_fallthru
        _
    $region40: #{tpu_custom_call.1} parent=5 // pred_fallthru
      _
    %p393 = scmp.le.s32.totalorder 2, %s11
    // Predicated region
    $region45: #{tpu_custom_call.1} parent=5 // pred_check
      %p394 = pneg %p393
    $region46: #{tpu_custom_call.1} parent=5 // pred_check_branch
      %396 = sbr.rel (%p394) target = $region48
    $region47: #{tpu_custom_call.1} parent=5 // pred_region
      %s397 = ssub.s32 %s11, 2
      // Predicated region
      $region49: #{tpu_custom_call.1} parent=47 // pred_check
        %p398 = pneg %p150
      $region50: #{tpu_custom_call.1} parent=47 // pred_check_branch
        %400 = sbr.rel (%p398) target = $region52
      $region51: #{tpu_custom_call.1} parent=47 // pred_region
        %s401 = smul.u32 4, %s17
        %p402 = scmp.lt.s32.totalorder %s401, 7
        %s403 = scalar_select %p402, %s401, 7
        %s404 = smul.addr %s403, 8
        %s405 = scalar_lea.vmem %s5, %s404
      $region52: #{tpu_custom_call.1} parent=47 // pred_fallthru
        _
    $region48: #{tpu_custom_call.1} parent=5 // pred_fallthru
      _
  $region6: #{tpu_custom_call.1} parent=0 // loop_footer
    %s15 = sadd.s32 1, %s11
  $region7: #{tpu_custom_call.1} parent=0 // loop_footer_branch
    %10 = sbr.rel target = $region3
  $region8: #{tpu_custom_call.1} parent=0 // loop_exit
    _

</llo_original>
